<compile_context>
chip_gen: v5e
topology: v5e:2x2
jax: 0.10.0
libtpu: 0.0.40
codegen_flags: <defaults>
</compile_context>

<pallas_src>
import jax
import jax.numpy as jnp
from jax.experimental import pallas as pl
from jax.experimental.pallas import tpu as pltpu


def _pos_embed_kernel(w_ref, out_ref):
    # w_ref:   (1, row_tile)  chunk of the flattened W_pos[:seq] row.
    # out_ref: (tb, row_tile) batch-slab x row-chunk output block.
    # Pure sublane broadcast; bound by the output HBM write DMA, so no
    # micro-optimization of the broadcast itself is warranted.
    out_ref[...] = jnp.broadcast_to(w_ref[...], out_ref.shape)


def pos_embed_forward(tokens, W_pos):
    """Equivalent of PosEmbed.forward.

    tokens: (batch, seq) int array (only its static shape is used).
    W_pos:  (max_length, d_residual) float array.
    returns (batch, seq, d_residual).
    """
    batch, seq = tokens.shape
    max_length, d_residual = W_pos.shape
    assert seq <= max_length

    row = seq * d_residual
    dsize = jnp.dtype(W_pos.dtype).itemsize
    total_bytes = batch * row * dsize

    # Lane-dense layout: a single (1, seq*d_residual) row. Metadata-only when
    # seq == max_length; otherwise a tiny seq*d copy, negligible vs. the
    # batch*seq*d output write the kernel performs.
    w_flat = W_pos[:seq, :].reshape(1, row)

    # ---- Block sizing -------------------------------------------------------
    # Target ~4 MiB output blocks, but never fewer than ~8 grid steps over the
    # whole output (so writeback of step i-1 overlaps the fill of step i).
    block_bytes_target = min(4 << 20, max(1, total_bytes // 8))

    # Sublane packing of the batch axis for this dtype: 8 rows for f32,
    # 16 for bf16, 32 for int8/fp8.
    sublane_pack = 8 * max(1, 4 // dsize)

    # Row-chunk (lane) tile: a multiple of 128, or the full row when the row
    # isn't 128-aligned (the only other legal choice).
    if row % 128 == 0 and row > 128:
        cols = block_bytes_target // (sublane_pack * dsize)
        row_tile = int(min(row, max(128, (cols // 128) * 128)))
    else:
        row_tile = row

    # Batch (sublane) tile: as many rows as still fit the byte target, rounded
    # DOWN to the sublane packing — never up, never past the batch axis.
    rows = max(1, block_bytes_target // max(1, row_tile * dsize))
    if rows >= batch:
        tb = batch                       # full batch axis: always legal
    elif rows >= sublane_pack:
        tb = (rows // sublane_pack) * sublane_pack
    else:
        # Budget can't hold a packed slab; use the smallest legal batch tile
        # (full axis if it's tiny, else one packed slab) and rely on row
        # tiling to bound the block size.
        tb = batch if batch <= sublane_pack else sublane_pack

    grid = (pl.cdiv(batch, tb), pl.cdiv(row, row_tile))

    # ---- VMEM limit derived from the actual footprint -----------------------
    out_block_bytes = tb * row_tile * dsize
    in_block_bytes = row_tile * dsize
    footprint = 2 * out_block_bytes + 2 * in_block_bytes + (2 << 20)  # + slack
    vmem_limit = int(min(32 << 20, max(8 << 20, footprint)))

    out2d = pl.pallas_call(
        _pos_embed_kernel,
        out_shape=jax.ShapeDtypeStruct((batch, row), W_pos.dtype),
        grid_spec=pltpu.PrefetchScalarGridSpec(
            num_scalar_prefetch=0,
            grid=grid,
            in_specs=[
                # W_pos row chunk; independent of the batch-slab index, so it
                # stays VMEM-resident across the inner batch sweep.
                pl.BlockSpec((1, row_tile), lambda b, r: (0, r)),
            ],
            out_specs=pl.BlockSpec((tb, row_tile), lambda b, r: (b, r)),
        ),
        compiler_params=pltpu.CompilerParams(
            # Every output block is written exactly once -> both axes are
            # embarrassingly parallel.
            dimension_semantics=("parallel", "parallel"),
            vmem_limit_bytes=vmem_limit,
        ),
        cost_estimate=pl.CostEstimate(
            flops=0,
            transcendentals=0,
            bytes_accessed=row * dsize + total_bytes,
        ),
    )(w_flat)

    # (batch, seq*d) -> (batch, seq, d): contiguous row-major reshape.
    return out2d.reshape(batch, seq, d_residual)


if __name__ == "__main__":
    # Config implied by the module: max_length, d_residual, init_range.
    batch = 2
    seq = 8
    max_length = 8
    d_residual = 32
    init_range = 0.02

    key = jax.random.PRNGKey(0)
    k_w, k_tok = jax.random.split(key)

    # Deterministic parameter init: normal(std=init_range), like nn.init.normal_.
    W_pos = init_range * jax.random.normal(
        k_w, (max_length, d_residual), dtype=jnp.float32
    )

    # Token ids only matter for their shape (like in the PyTorch module).
    tokens = jax.random.randint(k_tok, (batch, seq), 0, 100, dtype=jnp.int32)

    out = pos_embed_forward(tokens, W_pos)
    out = jax.block_until_ready(out)

    # Reference check against plain-JAX semantics of the module.
    ref = jnp.broadcast_to(W_pos[:seq, :][None, :, :], (batch, seq, d_residual))
    assert out.shape == (batch, seq, d_residual)
    assert out.dtype == W_pos.dtype
    assert jnp.allclose(out, ref)

    print("KERNEL_OK")
</pallas_src>

<mosaic_0001>
module attributes {stable_mosaic.version = 11 : i64} {
  func.func @_pos_embed_kernel(%arg0: i32, %arg1: i32, %arg2: memref<1x128xf32, #tpu.memory_space<vmem>>, %arg3: memref<2x128xf32, #tpu.memory_space<vmem>>) attributes {dimension_semantics = [#tpu.dimension_semantics<parallel>, #tpu.dimension_semantics<parallel>], iteration_bounds = array<i64: 1, 2>, scalar_prefetch = 0 : i64, scratch_operands = 0 : i64, tpu.core_type = #tpu.core_type<tc>, window_params = [{transform_indices = @transform_0, window_bounds = array<i64: 1, 128>}, {transform_indices = @transform_1, window_bounds = array<i64: 2, 128>}]} {
    %c0 = arith.constant 0 : index
    %c0_0 = arith.constant 0 : index
    %0 = vector.load %arg2[%c0, %c0_0] : memref<1x128xf32, #tpu.memory_space<vmem>>, vector<1x128xf32>
    %1 = vector.shape_cast %0 : vector<1x128xf32> to vector<1x128xf32>
    %2 = vector.broadcast %1 : vector<1x128xf32> to vector<2x128xf32>
    %c0_1 = arith.constant 0 : index
    %c0_2 = arith.constant 0 : index
    %3 = vector.load %arg3[%c0_1, %c0_2] : memref<2x128xf32, #tpu.memory_space<vmem>>, vector<2x128xf32>
    tpu.vector_store %arg3[%c0_1, %c0_2], %2 {strides = array<i32>} : memref<2x128xf32, #tpu.memory_space<vmem>>, vector<2x128xf32>,
    return
  }
  func.func @transform_0(%arg0: i32, %arg1: i32) -> (i32, i32) {
    %c0_i32 = arith.constant 0 : i32
    %c0_i32_0 = arith.constant 0 : i32
    return %c0_i32, %arg1 : i32, i32
  }
  func.func @transform_1(%arg0: i32, %arg1: i32) -> (i32, i32) {
    %c0_i32 = arith.constant 0 : i32
    return %arg0, %arg1 : i32, i32
  }
}

</mosaic_0001>

<llo_original>
// kernel: tpu_custom_call.1
$region0: #{tpu_custom_call.1}
  #allocation0 [shape = 'u32[]', space=smem, size = 0x4, offset = 0x4, fixed_abs, tag = 'smem constant byte address 0x4 - core index']
  #allocation1 [shape = 'u32[72,128]{1,0:T(1,128)}', space=vmem, size = 0x9000, scoped, tag = 'internal scratch']
  %s0 = inlined_call_operand.hbm [shape: f32[1,256], index: 0, kind: input, shape index: {}]
  %s1 = inlined_call_operand.hbm [shape: f32[2,256], index: 1, kind: output, shape index: {}]
  %s2 = sld [smem:[#allocation0]]
  $region41: #{tpu_custom_call.1} parent=0
    _
  %s4 = ssub.s32 1, %s2
  %s5 = scalar_select 0, %s4, %s2
  $region1: #{tpu_custom_call.1} parent=0
    #allocation2 [shape = 'u8[1024]{0}', space=vmem, size = 0x400, scoped, tag = 'input window, operand 0']
    #allocation3 [shape = 's32[2]{0}', space=sflag, size = 0x8, scoped, tag = 'scoped memory for tpu_custom_call.1']
    #allocation4 [shape = 's32[2]{0}', space=sflag, size = 0x8, scoped, tag = 'scoped memory for tpu_custom_call.1']
    #allocation5 [shape = 'u8[2048]{0}', space=vmem, size = 0x800, scoped, tag = 'output window, operand 0']
    %6 = vsyncpa [#allocation3], 0
    %s7 = scalar_lea.sflag [#allocation3], 1
    %8 = vsyncpa %s7, 0
    %9 = vsyncpa [#allocation4], 0
    %s10 = scalar_lea.sflag [#allocation4], 1
    %11 = vsyncpa %s10, 0
    loop: start=0, step=1, limit=4
    $region2: #{tpu_custom_call.1} parent=1 // loop_pre_header
      _
    $region3: #{tpu_custom_call.1} parent=1 // loop_header
      %s13 = sphi 0, %s17
      %p14 = scmp.ge.s32.totalorder %s13, 4
      %s20 = sphi 0, %s32
      %s21 = sphi 0, %s28
      %s22 = sphi 0, %s20
      %s23 = sphi 0, %s21
      %s24 = sphi 0, %s22
      %s25 = sphi 0, %s23
      %s35 = sphi 0, %s37
      %s38 = sphi 0, %s35
      %s39 = sphi 0, %s38
      %s55 = sphi 0, %s39
      %s63 = sphi 0, %s65
      %s66 = sphi 0, %s63
      %s67 = sphi 0, %s66
      %s83 = sphi 0, %s67
    $region4: #{tpu_custom_call.1} parent=1 // loop_header_branch
      %16 = sbr.rel (%p14) target = $region8
    $region5: #{tpu_custom_call.1} parent=1 // loop_body
      %s18 = ssub.s32 %s13, 1
      %s19 = ssub.s32 %s13, 2
      %s26 = sadd.s32 1, %s21
      %p27 = scmp.ge.s32.totalorder %s26, 2
      %s28 = scalar_select %p27, 0, %s26
      %s29 = sadd.s32 1, %s20
      %s30 = scalar_select %p27, %s29, %s20
      %p31 = scmp.ge.s32.totalorder %s30, 1
      %s32 = scalar_select %p31, 0, %s30
      %s33 = ssub.s32 %s21, %s28
      %p34 = scmp.eq.s32.totalorder %s33, 0
      %s36 = sadd.s32 %s35, 1
      %s37 = scalar_select %p34, %s35, %s36
      %p40 = pneg %p34
      %p41 = scmp.eq.s32.totalorder %s13, 1
      %p42 = por %p40, %p41
      %p43 = scmp.ne.s32.totalorder %s35, %s38
      %p44 = scmp.eq.s32.totalorder %s13, 0
      %p45 = por %p43, %p44
      %p46 = scmp.ne.s32.totalorder %s35, %s38
      %p47 = scmp.eq.s32.totalorder %s18, 1
      %p48 = por %p46, %p47
      %p49 = scmp.ne.s32.totalorder %s38, %s39
      %p50 = scmp.eq.s32.totalorder %s18, 0
      %p51 = por %p49, %p50
      %p52 = scmp.ne.s32.totalorder %s38, %s39
      %p53 = scmp.eq.s32.totalorder %s19, 1
      %p54 = por %p52, %p53
      %p56 = scmp.ne.s32.totalorder %s39, %s55
      %p57 = scmp.eq.s32.totalorder %s19, 0
      %p58 = por %p56, %p57
      %s59 = ssub.s32 %s20, %s32
      %s60 = ssub.s32 %s21, %s28
      %s61 = sor.u32 %s59, %s60
      %p62 = scmp.eq.s32.totalorder %s61, 0
      %s64 = sadd.s32 %s63, 1
      %s65 = scalar_select %p62, %s63, %s64
      %p68 = pneg %p62
      %p69 = scmp.eq.s32.totalorder %s13, 1
      %p70 = por %p68, %p69
      %p71 = scmp.ne.s32.totalorder %s63, %s66
      %p72 = scmp.eq.s32.totalorder %s13, 0
      %p73 = por %p71, %p72
      %p74 = scmp.ne.s32.totalorder %s63, %s66
      %p75 = scmp.eq.s32.totalorder %s18, 1
      %p76 = por %p74, %p75
      %p77 = scmp.ne.s32.totalorder %s66, %s67
      %p78 = scmp.eq.s32.totalorder %s18, 0
      %p79 = por %p77, %p78
      %p80 = scmp.ne.s32.totalorder %s66, %s67
      %p81 = scmp.eq.s32.totalorder %s19, 1
      %p82 = por %p80, %p81
      %p84 = scmp.ne.s32.totalorder %s67, %s83
      %p85 = scmp.eq.s32.totalorder %s19, 0
      %p86 = por %p84, %p85
      %p87 = scmp.le.s32.totalorder 1, %s13
      %p88 = scmp.lt.s32.totalorder %s13, 3
      %p89 = pnand %p87, %p88
      %p90 = pneg %p89
      // Predicated region
      $region9: #{tpu_custom_call.1} parent=5 // pred_check
        _
      $region10: #{tpu_custom_call.1} parent=5 // pred_check_branch
        %92 = sbr.rel (%p89) target = $region12
      $region11: #{tpu_custom_call.1} parent=5 // pred_region
        %s93 = ssub.s32 %s13, 1
      $region12: #{tpu_custom_call.1} parent=5 // pred_fallthru
        _
      %p94 = scmp.lt.s32.totalorder %s13, 2
      // Predicated region
      $region13: #{tpu_custom_call.1} parent=5 // pred_check
        %p95 = pneg %p94
      $region14: #{tpu_custom_call.1} parent=5 // pred_check_branch
        %97 = sbr.rel (%p95) target = $region16
      $region15: #{tpu_custom_call.1} parent=5 // pred_region
        // Predicated region
        $region17: #{tpu_custom_call.1} parent=15 // pred_check
          %p98 = pneg %p45
        $region18: #{tpu_custom_call.1} parent=15 // pred_check_branch
          %100 = sbr.rel (%p98) target = $region20
        $region19: #{tpu_custom_call.1} parent=15 // pred_region
          %s101 = sand.u32 %s35, 1
          %s102 = scalar_lea.sflag [#allocation3], %s101
          %s103 = sand.u32 %s35, 1
          %s104 = scalar_lea.vmem [#allocation2], %s103
          %106 = vsyncadd %s102, 0
          %s107 = scalar_lea.hbm %s0, %s21
          %s109 = sshll.u32 %s107, 4
          %s110 = int_to_ptr.hbm [resolvable:$true] %s109
          %s111 = sshll.u32 %s104, 4
          %s112 = int_to_ptr.vmem [resolvable:$true] %s111
          %114 = dma.hbm_to_vmem [thread:$0]  %s110, 16, %s112, %s102
        $region20: #{tpu_custom_call.1} parent=15 // pred_fallthru
          _
      $region16: #{tpu_custom_call.1} parent=5 // pred_fallthru
        _
      %p115 = scmp.le.s32.totalorder 1, %s13
      %p116 = scmp.lt.s32.totalorder %s13, 3
      %p117 = pnand %p115, %p116
      %p118 = pneg %p117
      // Predicated region
      $region21: #{tpu_custom_call.1} parent=5 // pred_check
        _
      $region22: #{tpu_custom_call.1} parent=5 // pred_check_branch
        %120 = sbr.rel (%p117) target = $region24
      $region23: #{tpu_custom_call.1} parent=5 // pred_region
        %s121 = ssub.s32 %s13, 1
        %s122 = sand.u32 %s38, 1
        %s123 = scalar_lea.sflag [#allocation3], %s122
        %s124 = sand.u32 %s38, 1
        %s125 = scalar_lea.vmem [#allocation2], %s124
        // Predicated region
        $region25: #{tpu_custom_call.1} parent=23 // pred_check
          %p126 = pneg %p51
        $region26: #{tpu_custom_call.1} parent=23 // pred_check_branch
          %128 = sbr.rel (%p126) target = $region28
        $region27: #{tpu_custom_call.1} parent=23 // pred_region
          %130 = dma.done %s123, 16
        $region28: #{tpu_custom_call.1} parent=23 // pred_fallthru
          _
        %s131 = sand.u32 %s38, 1
        %s132 = scalar_lea.sflag [#allocation3], %s131
        %s133 = sand.u32 %s38, 1
        %s134 = scalar_lea.vmem [#allocation2], %s133
        %p135 = pneg %p51
        %p136 = pneg %p48
        %p137 = pneg %p79
        %p138 = pneg %p76
        %s139 = sand.u32 %s66, 1
        %s140 = scalar_lea.sflag [#allocation4], %s139
        %s141 = sand.u32 %s66, 1
        %s142 = smul.addr %s141, 2
        %s143 = scalar_lea.vmem [#allocation5], %s142
        %v144 = vld [vmem:[%s125] sm:$0x1]
        %v146 = vperm.slane %v144, 0
        %148 = vst [vmem:[%s143] sm:$0x3] %v146
        %s149 = sand.u32 %s66, 1
        %s150 = scalar_lea.sflag [#allocation4], %s149
        %s151 = sand.u32 %s66, 1
        %s152 = smul.addr %s151, 2
        %s153 = scalar_lea.vmem [#allocation5], %s152
        // Predicated region
        $region29: #{tpu_custom_call.1} parent=23 // pred_check
          %p154 = pneg %p76
        $region30: #{tpu_custom_call.1} parent=23 // pred_check_branch
          %156 = sbr.rel (%p154) target = $region32
        $region31: #{tpu_custom_call.1} parent=23 // pred_region
          %158 = vsyncadd %s150, 0
          %s159 = smul.addr %s22, 2
          %s160 = sadd.s32 %s23, %s159
          %s161 = smul.addr %s160, 2
          %s162 = scalar_lea.hbm %s1, %s161
          %s164 = sshll.u32 %s153, 4
          %s165 = int_to_ptr.vmem [resolvable:$true] %s164
          %s166 = sshll.u32 %s162, 4
          %s167 = int_to_ptr.hbm [resolvable:$true] %s166
          %169 = dma.vmem_to_hbm [thread:$0]  %s165, 32, %s167, %s150
        $region32: #{tpu_custom_call.1} parent=23 // pred_fallthru
          _
      $region24: #{tpu_custom_call.1} parent=5 // pred_fallthru
        _
      %p170 = scmp.le.s32.totalorder 2, %s13
      // Predicated region
      $region33: #{tpu_custom_call.1} parent=5 // pred_check
        %p171 = pneg %p170
      $region34: #{tpu_custom_call.1} parent=5 // pred_check_branch
        %173 = sbr.rel (%p171) target = $region36
      $region35: #{tpu_custom_call.1} parent=5 // pred_region
        %s174 = ssub.s32 %s13, 2
        // Predicated region
        $region37: #{tpu_custom_call.1} parent=35 // pred_check
          %p175 = pneg %p82
        $region38: #{tpu_custom_call.1} parent=35 // pred_check_branch
          %177 = sbr.rel (%p175) target = $region40
        $region39: #{tpu_custom_call.1} parent=35 // pred_region
          %s178 = sand.u32 %s67, 1
          %s179 = scalar_lea.sflag [#allocation4], %s178
          %s180 = sand.u32 %s67, 1
          %s181 = smul.addr %s180, 2
          %s182 = scalar_lea.vmem [#allocation5], %s181
          %184 = dma.done %s179, 32
        $region40: #{tpu_custom_call.1} parent=35 // pred_fallthru
          _
      $region36: #{tpu_custom_call.1} parent=5 // pred_fallthru
        _
    $region6: #{tpu_custom_call.1} parent=1 // loop_footer
      %s17 = sadd.s32 1, %s13
    $region7: #{tpu_custom_call.1} parent=1 // loop_footer_branch
      %12 = sbr.rel target = $region3
    $region8: #{tpu_custom_call.1} parent=1 // loop_exit
      _
    %185 = vsyncpa [#allocation3], 1
    %s186 = scalar_lea.sflag [#allocation3], 1
    %187 = vsyncpa %s186, 1
    %188 = vsyncpa [#allocation4], 1
    %s189 = scalar_lea.sflag [#allocation4], 1
    %190 = vsyncpa %s189, 1

</llo_original>
